<compile_context>
chip_gen: v7x
topology: tpu7x:2x2x1
jax: 0.10.0
libtpu: 0.0.40
codegen_flags: <defaults>
</compile_context>

<pallas_src>
import jax
import jax.numpy as jnp
from jax.experimental import pallas as pl
from jax.experimental.pallas import tpu as pltpu


# ----------------------------------------------------------------------------
# Fused kernel: ctx-band write-back (aliased prompts buffer) + all projections.
# ----------------------------------------------------------------------------
def _make_fused_kernel(n_cls, n_ctx, ctx_dim, head, n_comp):
    def kernel(base_ref, head_ref, ctx_ref, pw_ref, pb_ref,
               cpt_ref, cw_ref, cb_ref,
               prompts_ref, shared_ref, vis_ref, head_scr, sem):
        # base_ref   : (n_cls, S, D) HBM -- aliased with prompts_ref (same buffer),
        #              prefix/suffix already live there; never touched.
        # head_ref   : (n_cls, head, D) VMEM -- prefix | <ctx band> | suffix head rows
        # ctx_ref    : (n_ctx, ctx_dim)
        # pw_ref/pb_ref         : (ctx_dim, vis) / (1, vis)
        # cpt_ref/cw_ref/cb_ref : (n_comp, n_ctx, vis) / (n_comp, vis, vis) / (n_comp, 1, vis)
        # prompts_ref: (n_cls, S, D) HBM output (== base_ref buffer)
        # shared_ref : (n_ctx, vis)      vis_ref : (n_comp, n_ctx, vis)
        del base_ref  # identical buffer to prompts_ref

        # --- prompts: overwrite only the aligned head band of the persistent
        #     buffer (rows [0, head)); suffix tail never moves. --------------
        head_scr[...] = head_ref[...]
        ctx_b = jnp.broadcast_to(ctx_ref[...][None, :, :], (n_cls, n_ctx, ctx_dim))
        head_scr[:, 1:1 + n_ctx, :] = ctx_b.astype(head_scr.dtype)
        copy = pltpu.make_async_copy(
            head_scr, prompts_ref.at[:, pl.ds(0, head), :], sem)
        copy.start()

        # --- projections (overlap with the write-back DMA) -------------------
        shared_ref[...] = (
            jnp.dot(ctx_ref[...], pw_ref[...],
                    preferred_element_type=jnp.float32) + pb_ref[...]
        ).astype(shared_ref.dtype)
        for d in range(n_comp):           # tiny, static; direct per-slice stores
            vis_ref[d] = (
                jnp.dot(cpt_ref[d], cw_ref[d],
                        preferred_element_type=jnp.float32) + cb_ref[d]
            ).astype(vis_ref.dtype)

        copy.wait()

    return kernel


def maple_prompt_learner_fused(prompt_base, head_base, ctx, proj_w, proj_b,
                               cpt_stack, cw_stack, cb_stack):
    """Single pallas_call computing (prompts, shared_ctx, visual_deep_stack).

    prompt_base : (n_cls, S, D) persistent prompts buffer (aliased to output 0)
    head_base   : (n_cls, head, D) first `head` rows of prompt_base (frozen)
    ctx         : (n_ctx, ctx_dim)
    proj_w/b    : (ctx_dim, vis_dim) / (1, vis_dim)
    cpt/cw/cb   : (n_comp, n_ctx, vis) / (n_comp, vis, vis) / (n_comp, 1, vis)
    """
    n_cls, S, D = prompt_base.shape
    head = head_base.shape[1]
    n_ctx, ctx_dim = ctx.shape
    vis_dim = proj_w.shape[1]
    n_comp = cpt_stack.shape[0]
    assert ctx_dim == D and proj_w.shape[0] == ctx_dim
    assert cw_stack.shape[1] == cpt_stack.shape[2]   # compound in_dim == prompt dim
    assert 1 + n_ctx <= head <= S

    itemsize = prompt_base.dtype.itemsize
    cost = pl.CostEstimate(
        flops=2 * n_ctx * ctx_dim * vis_dim
              + n_comp * 2 * n_ctx * vis_dim * vis_dim,
        transcendentals=0,
        bytes_accessed=itemsize * (
            2 * n_cls * head * D
            + n_ctx * ctx_dim + ctx_dim * vis_dim + vis_dim
            + n_comp * (n_ctx * vis_dim + vis_dim * vis_dim + vis_dim)
            + n_ctx * vis_dim + n_comp * n_ctx * vis_dim))

    kernel = _make_fused_kernel(n_cls, n_ctx, ctx_dim, head, n_comp)

    prompts, shared_ctx, visual_stack = pl.pallas_call(
        kernel,
        out_shape=(
            jax.ShapeDtypeStruct((n_cls, S, D), prompt_base.dtype),
            jax.ShapeDtypeStruct((n_ctx, vis_dim), ctx.dtype),
            jax.ShapeDtypeStruct((n_comp, n_ctx, vis_dim), ctx.dtype),
        ),
        in_specs=[
            pl.BlockSpec(memory_space=pl.ANY),                          # prompt_base (aliased, stays in HBM)
            pl.BlockSpec((n_cls, head, D), lambda: (0, 0, 0)),          # head band
            pl.BlockSpec((n_ctx, ctx_dim), lambda: (0, 0)),
            pl.BlockSpec((ctx_dim, vis_dim), lambda: (0, 0)),
            pl.BlockSpec((1, vis_dim), lambda: (0, 0)),
            pl.BlockSpec((n_comp, n_ctx, cpt_stack.shape[2]), lambda: (0, 0, 0)),
            pl.BlockSpec((n_comp, cw_stack.shape[1], vis_dim), lambda: (0, 0, 0)),
            pl.BlockSpec((n_comp, 1, vis_dim), lambda: (0, 0, 0)),
        ],
        out_specs=(
            pl.BlockSpec(memory_space=pl.ANY),                          # prompts (HBM, manual DMA)
            pl.BlockSpec((n_ctx, vis_dim), lambda: (0, 0)),
            pl.BlockSpec((n_comp, n_ctx, vis_dim), lambda: (0, 0, 0)),
        ),
        scratch_shapes=[pltpu.VMEM((n_cls, head, D), prompt_base.dtype),
                        pltpu.SemaphoreType.DMA(())],
        input_output_aliases={0: 0},   # prompts output reuses the prompt_base buffer
        compiler_params=pltpu.CompilerParams(vmem_limit_bytes=32 * 1024 * 1024),
        cost_estimate=cost,
    )(prompt_base, head_base, ctx, proj_w, proj_b, cpt_stack, cw_stack, cb_stack)
    return prompts, shared_ctx, visual_stack


# ----------------------------------------------------------------------------
# Module: parameter construction (deterministic) + forward
# ----------------------------------------------------------------------------
def init_params(key, *, n_cls, n_ctx, ctx_dim, vis_dim, seq_len, depth,
                dtype=jnp.float32):
    # TODO(synk): PROMPT_DEPTH == 1 (no compound prompts) needs a kernel variant
    # without the compound-stack inputs; only depth >= 2 is fused here.
    assert depth >= 2
    n_comp = depth - 1
    n_suf = seq_len - 1 - n_ctx
    assert n_suf > 0
    k = jax.random.split(key, 8)
    params = {
        # ctx vectors ~ N(0, 0.02)  (the "X X X X" random-init branch)
        "ctx":    (0.02 * jax.random.normal(k[0], (n_ctx, ctx_dim))).astype(dtype),
        # proj: Linear(ctx_dim, vis_dim), stored (in, out) so y = x @ W + b
        "proj_w": (0.02 * jax.random.normal(k[1], (ctx_dim, vis_dim))).astype(dtype),
        "proj_b": (0.02 * jax.random.normal(k[2], (1, vis_dim))).astype(dtype),
        # compound prompts + projections, pre-stacked ONCE at init
        "cpt_stack": (0.02 * jax.random.normal(k[3], (n_comp, n_ctx, vis_dim))).astype(dtype),
        "cw_stack":  (0.02 * jax.random.normal(k[4], (n_comp, vis_dim, vis_dim))).astype(dtype),
        "cb_stack":  (0.02 * jax.random.normal(k[5], (n_comp, 1, vis_dim))).astype(dtype),
        # frozen CLIP token-embedding stand-ins
        "token_prefix": jax.random.normal(k[6], (n_cls, 1, ctx_dim)).astype(dtype),
        "token_suffix": jax.random.normal(k[7], (n_cls, n_suf, ctx_dim)).astype(dtype),
    }
    # Persistent prompts buffer: prefix/suffix baked in, ctx band rewritten by
    # the kernel every forward (buffer is aliased to the prompts output).
    prompt_base = jnp.concatenate(
        [params["token_prefix"],
         jnp.zeros((n_cls, n_ctx, ctx_dim), dtype),
         params["token_suffix"]], axis=1)
    # Head band = [prefix | ctx | a few suffix rows], rounded up to a multiple
    # of 8 sublanes so the single write-back DMA is tile-aligned.
    head = min(seq_len, ((1 + n_ctx + 7) // 8) * 8)
    params["head_base"] = prompt_base[:, :head, :]
    return params, prompt_base


def multimodal_prompt_learner_forward(params, prompt_base):
    """Returns (prompts, shared_ctx, compound_prompts_text, visual_deep_prompts).

    `prompt_base` is the persistent prompts buffer; the returned `prompts`
    aliases it (donate it under jit and thread it through successive calls).
    """
    prompts, shared_ctx, visual_stack = maple_prompt_learner_fused(
        prompt_base, params["head_base"], params["ctx"],
        params["proj_w"], params["proj_b"],
        params["cpt_stack"], params["cw_stack"], params["cb_stack"])
    n_comp = params["cpt_stack"].shape[0]
    compound_prompts_text = [params["cpt_stack"][i] for i in range(n_comp)]  # pass-through params
    visual_deep_prompts = [visual_stack[i] for i in range(n_comp)]
    return prompts, shared_ctx, compound_prompts_text, visual_deep_prompts


# ----------------------------------------------------------------------------
if __name__ == "__main__":
    # Small, module-consistent shapes: 14 classnames, n_ctx=4 context tokens,
    # ctx_dim=vis_dim=128 (lane-aligned stand-in for CLIP 512/768), tokenized
    # sequence length 16 (stand-in for 77), PROMPT_DEPTH=3.
    n_cls, n_ctx, ctx_dim, vis_dim, seq_len, depth = 14, 4, 128, 128, 16, 3

    key = jax.random.PRNGKey(0)
    params, prompt_base = init_params(key, n_cls=n_cls, n_ctx=n_ctx,
                                      ctx_dim=ctx_dim, vis_dim=vis_dim,
                                      seq_len=seq_len, depth=depth)

    forward = jax.jit(multimodal_prompt_learner_forward, donate_argnums=(1,))
    out = jax.block_until_ready(forward(params, prompt_base))
    prompts, shared_ctx, compound_text, visual_deep = out
    # NOTE: prompt_base was donated (its buffer now backs `prompts`); don't reuse it.

    # Reference check in plain JAX (same math, no Pallas).
    ref_prompts = jnp.concatenate(
        [params["token_prefix"],
         jnp.broadcast_to(params["ctx"][None], (n_cls, n_ctx, ctx_dim)),
         params["token_suffix"]], axis=1)
    ref_shared = params["ctx"] @ params["proj_w"] + params["proj_b"]
    ref_visual = [params["cpt_stack"][i] @ params["cw_stack"][i] + params["cb_stack"][i]
                  for i in range(depth - 1)]

    assert prompts.shape == (n_cls, seq_len, ctx_dim)
    assert shared_ctx.shape == (n_ctx, vis_dim)
    assert len(compound_text) == depth - 1 and len(visual_deep) == depth - 1
    assert jnp.allclose(prompts, ref_prompts, atol=1e-6)
    assert jnp.allclose(shared_ctx, ref_shared, atol=1e-3)
    for got, ref in zip(visual_deep, ref_visual):
        assert jnp.allclose(got, ref, atol=1e-3)
    for i, got in enumerate(compound_text):
        assert jnp.allclose(got, params["cpt_stack"][i])

    print("KERNEL_OK")
</pallas_src>

<mosaic_0001>
module attributes {stable_mosaic.version = 11 : i64} {
  func.func @kernel(%arg0: memref<14x16x128xf32, #tpu.memory_space<any>>, %arg1: memref<14x8x128xf32, #tpu.memory_space<vmem>>, %arg2: memref<4x128xf32, #tpu.memory_space<vmem>>, %arg3: memref<128x128xf32, #tpu.memory_space<vmem>>, %arg4: memref<1x128xf32, #tpu.memory_space<vmem>>, %arg5: memref<2x4x128xf32, #tpu.memory_space<vmem>>, %arg6: memref<2x128x128xf32, #tpu.memory_space<vmem>>, %arg7: memref<2x1x128xf32, #tpu.memory_space<vmem>>, %arg8: memref<14x16x128xf32, #tpu.memory_space<any>>, %arg9: memref<4x128xf32, #tpu.memory_space<vmem>>, %arg10: memref<2x4x128xf32, #tpu.memory_space<vmem>>, %arg11: memref<14x8x128xf32, #tpu.memory_space<vmem>>, %arg12: memref<!tpu.dma_semaphore, #tpu.memory_space<semaphore_mem>>) attributes {dimension_semantics = [], scalar_prefetch = 0 : i64, scratch_operands = 2 : i64, tpu.core_type = #tpu.core_type<tc>} {
    %c0 = arith.constant 0 : index
    %c0_0 = arith.constant 0 : index
    %c0_1 = arith.constant 0 : index
    %0 = vector.load %arg1[%c0, %c0_0, %c0_1] : memref<14x8x128xf32, #tpu.memory_space<vmem>>, vector<14x8x128xf32>
    %c0_2 = arith.constant 0 : index
    %c0_3 = arith.constant 0 : index
    %c0_4 = arith.constant 0 : index
    %1 = vector.load %arg11[%c0_2, %c0_3, %c0_4] : memref<14x8x128xf32, #tpu.memory_space<vmem>>, vector<14x8x128xf32>
    tpu.vector_store %arg11[%c0_2, %c0_3, %c0_4], %0 {strides = array<i32>} : memref<14x8x128xf32, #tpu.memory_space<vmem>>, vector<14x8x128xf32>,
    %c0_5 = arith.constant 0 : index
    %c0_6 = arith.constant 0 : index
    %2 = vector.load %arg2[%c0_5, %c0_6] : memref<4x128xf32, #tpu.memory_space<vmem>>, vector<4x128xf32>
    %3 = vector.shape_cast %2 : vector<4x128xf32> to vector<1x4x128xf32>
    %4 = vector.shape_cast %3 : vector<1x4x128xf32> to vector<1x4x128xf32>
    %5 = vector.broadcast %4 : vector<1x4x128xf32> to vector<14x4x128xf32>
    %c0_7 = arith.constant 0 : index
    %c1 = arith.constant 1 : index
    %c0_8 = arith.constant 0 : index
    %6 = vector.load %arg11[%c0_7, %c1, %c0_8] : memref<14x8x128xf32, #tpu.memory_space<vmem>>, vector<14x4x128xf32>
    tpu.vector_store %arg11[%c0_7, %c1, %c0_8], %5 {strides = array<i32>} : memref<14x8x128xf32, #tpu.memory_space<vmem>>, vector<14x4x128xf32>,
    %c0_i32 = arith.constant 0 : i32
    %c0_i32_9 = arith.constant 0 : i32
    %c0_i32_10 = arith.constant 0 : i32
    %7 = tpu.memref_slice %arg8[%c0_i32, %c0_i32_9, %c0_i32_10] : memref<14x16x128xf32, #tpu.memory_space<any>> -> memref<14x8x128xf32, #tpu.memory_space<any>>
    tpu.enqueue_dma source(%arg11 : memref<14x8x128xf32, #tpu.memory_space<vmem>>) target(%7 : memref<14x8x128xf32, #tpu.memory_space<any>>) target_semaphore(%arg12 : memref<!tpu.dma_semaphore, #tpu.memory_space<semaphore_mem>>)
    %c0_11 = arith.constant 0 : index
    %c0_12 = arith.constant 0 : index
    %8 = vector.load %arg2[%c0_11, %c0_12] : memref<4x128xf32, #tpu.memory_space<vmem>>, vector<4x128xf32>
    %c0_13 = arith.constant 0 : index
    %c0_14 = arith.constant 0 : index
    %9 = vector.load %arg3[%c0_13, %c0_14] : memref<128x128xf32, #tpu.memory_space<vmem>>, vector<128x128xf32>
    %cst = arith.constant dense<0.000000e+00> : vector<4x128xf32>
    %10 = tpu.matmul %8, %9, %cst {dimension_numbers = #tpu.dot_dimension_numbers<[1], [0], [0], [1], [0, 0, 1, 1], [], []>} : vector<4x128xf32>, vector<128x128xf32>, vector<4x128xf32> -> vector<4x128xf32>
    %c0_15 = arith.constant 0 : index
    %c0_16 = arith.constant 0 : index
    %11 = vector.load %arg4[%c0_15, %c0_16] : memref<1x128xf32, #tpu.memory_space<vmem>>, vector<1x128xf32>
    %12 = vector.broadcast %11 : vector<1x128xf32> to vector<4x128xf32>
    %13 = arith.addf %10, %12 : vector<4x128xf32>
    %c0_17 = arith.constant 0 : index
    %c0_18 = arith.constant 0 : index
    %14 = vector.load %arg9[%c0_17, %c0_18] : memref<4x128xf32, #tpu.memory_space<vmem>>, vector<4x128xf32>
    tpu.vector_store %arg9[%c0_17, %c0_18], %13 {strides = array<i32>} : memref<4x128xf32, #tpu.memory_space<vmem>>, vector<4x128xf32>,
    %c0_19 = arith.constant 0 : index
    %c0_20 = arith.constant 0 : index
    %c0_21 = arith.constant 0 : index
    %15 = vector.load %arg5[%c0_19, %c0_20, %c0_21] : memref<2x4x128xf32, #tpu.memory_space<vmem>>, vector<1x4x128xf32>
    %16 = vector.shape_cast %15 : vector<1x4x128xf32> to vector<4x128xf32>
    %c0_22 = arith.constant 0 : index
    %c0_23 = arith.constant 0 : index
    %c0_24 = arith.constant 0 : index
    %17 = vector.load %arg6[%c0_22, %c0_23, %c0_24] : memref<2x128x128xf32, #tpu.memory_space<vmem>>, vector<1x128x128xf32>
    %18 = vector.shape_cast %17 : vector<1x128x128xf32> to vector<128x128xf32>
    %cst_25 = arith.constant dense<0.000000e+00> : vector<4x128xf32>
    %19 = tpu.matmul %16, %18, %cst_25 {dimension_numbers = #tpu.dot_dimension_numbers<[1], [0], [0], [1], [0, 0, 1, 1], [], []>} : vector<4x128xf32>, vector<128x128xf32>, vector<4x128xf32> -> vector<4x128xf32>
    %c0_26 = arith.constant 0 : index
    %c0_27 = arith.constant 0 : index
    %c0_28 = arith.constant 0 : index
    %20 = vector.load %arg7[%c0_26, %c0_27, %c0_28] : memref<2x1x128xf32, #tpu.memory_space<vmem>>, vector<1x1x128xf32>
    %21 = vector.shape_cast %20 : vector<1x1x128xf32> to vector<1x128xf32>
    %22 = vector.broadcast %21 : vector<1x128xf32> to vector<4x128xf32>
    %23 = arith.addf %19, %22 : vector<4x128xf32>
    %c0_29 = arith.constant 0 : index
    %c0_30 = arith.constant 0 : index
    %c0_31 = arith.constant 0 : index
    %24 = vector.load %arg10[%c0_29, %c0_30, %c0_31] : memref<2x4x128xf32, #tpu.memory_space<vmem>>, vector<1x4x128xf32>
    %25 = vector.shape_cast %24 : vector<1x4x128xf32> to vector<4x128xf32>
    %26 = vector.shape_cast %23 : vector<4x128xf32> to vector<1x4x128xf32>
    tpu.vector_store %arg10[%c0_29, %c0_30, %c0_31], %26 {strides = array<i32>} : memref<2x4x128xf32, #tpu.memory_space<vmem>>, vector<1x4x128xf32>,
    %c1_32 = arith.constant 1 : index
    %c0_33 = arith.constant 0 : index
    %c0_34 = arith.constant 0 : index
    %27 = vector.load %arg5[%c1_32, %c0_33, %c0_34] : memref<2x4x128xf32, #tpu.memory_space<vmem>>, vector<1x4x128xf32>
    %28 = vector.shape_cast %27 : vector<1x4x128xf32> to vector<4x128xf32>
    %c1_35 = arith.constant 1 : index
    %c0_36 = arith.constant 0 : index
    %c0_37 = arith.constant 0 : index
    %29 = vector.load %arg6[%c1_35, %c0_36, %c0_37] : memref<2x128x128xf32, #tpu.memory_space<vmem>>, vector<1x128x128xf32>
    %30 = vector.shape_cast %29 : vector<1x128x128xf32> to vector<128x128xf32>
    %cst_38 = arith.constant dense<0.000000e+00> : vector<4x128xf32>
    %31 = tpu.matmul %28, %30, %cst_38 {dimension_numbers = #tpu.dot_dimension_numbers<[1], [0], [0], [1], [0, 0, 1, 1], [], []>} : vector<4x128xf32>, vector<128x128xf32>, vector<4x128xf32> -> vector<4x128xf32>
    %c1_39 = arith.constant 1 : index
    %c0_40 = arith.constant 0 : index
    %c0_41 = arith.constant 0 : index
    %32 = vector.load %arg7[%c1_39, %c0_40, %c0_41] : memref<2x1x128xf32, #tpu.memory_space<vmem>>, vector<1x1x128xf32>
    %33 = vector.shape_cast %32 : vector<1x1x128xf32> to vector<1x128xf32>
    %34 = vector.broadcast %33 : vector<1x128xf32> to vector<4x128xf32>
    %35 = arith.addf %31, %34 : vector<4x128xf32>
    %c1_42 = arith.constant 1 : index
    %c0_43 = arith.constant 0 : index
    %c0_44 = arith.constant 0 : index
    %36 = vector.load %arg10[%c1_42, %c0_43, %c0_44] : memref<2x4x128xf32, #tpu.memory_space<vmem>>, vector<1x4x128xf32>
    %37 = vector.shape_cast %36 : vector<1x4x128xf32> to vector<4x128xf32>
    %38 = vector.shape_cast %35 : vector<4x128xf32> to vector<1x4x128xf32>
    tpu.vector_store %arg10[%c1_42, %c0_43, %c0_44], %38 {strides = array<i32>} : memref<2x4x128xf32, #tpu.memory_space<vmem>>, vector<1x4x128xf32>,
    %c0_i32_45 = arith.constant 0 : i32
    %c0_i32_46 = arith.constant 0 : i32
    %c0_i32_47 = arith.constant 0 : i32
    %39 = tpu.memref_slice %arg8[%c0_i32_45, %c0_i32_46, %c0_i32_47] : memref<14x16x128xf32, #tpu.memory_space<any>> -> memref<14x8x128xf32, #tpu.memory_space<any>>
    tpu.wait_dma2 semaphore(%arg12 : memref<!tpu.dma_semaphore, #tpu.memory_space<semaphore_mem>>) src(%arg11 : memref<14x8x128xf32, #tpu.memory_space<vmem>>) dst(%39 : memref<14x8x128xf32, #tpu.memory_space<any>>)
    return
  }
}

</mosaic_0001>

<llo_original>
// kernel: multimodal_prompt_learner_forward.1
$region0: #{multimodal_prompt_learner_forward.1}
  #allocation0 [shape = 'u32[]', space=smem, size = 0x4, offset = 0x4, fixed_abs, tag = 'smem constant byte address 0x4 - core index']
  #allocation1 [shape = 'u32[144,128]{1,0:T(1,128)}', space=vmem, size = 0x12000, scoped, tag = 'internal scratch']
  #allocation2 [shape = 'f32[14,8,128]{2,1,0:T(8,128)}', space=vmem, size = 0xe000, scoped, tag = 'scratch operand']
  #allocation3 [shape = 's32[1]{0}', space=sflag, size = 0x4, scoped, tag = 'scratch operand']
  #allocation14 [shape = 's32[]', space=sflag, size = 0x4, offset = 0, fixed_abs, tag = 'sflag constant byte address 0x0 - dummy sync flag']
  %s0 = inlined_call_operand.hbm [shape: f32[14,16,128], index: 0, kind: input, shape index: {}, may-alias: {0,8}]
  %s1 = inlined_call_operand.hbm [shape: f32[14,8,128], index: 1, kind: input, shape index: {}]
  %s2 = inlined_call_operand.hbm [shape: f32[4,128], index: 2, kind: input, shape index: {}]
  %s3 = inlined_call_operand.hbm [shape: f32[128,128], index: 3, kind: input, shape index: {}]
  %s4 = inlined_call_operand.vmem [shape: f32[1,128], index: 4, kind: input, shape index: {}]
  %s5 = inlined_call_operand.vmem [shape: f32[2,4,128], index: 5, kind: input, shape index: {}]
  %s6 = inlined_call_operand.hbm [shape: f32[2,128,128], index: 6, kind: input, shape index: {}]
  %s7 = inlined_call_operand.hbm [shape: f32[2,1,128], index: 7, kind: input, shape index: {}]
  %s8 = inlined_call_operand.hbm [shape: f32[14,16,128], index: 8, kind: output, shape index: {0}, may-alias: {0,8}]
  %s9 = inlined_call_operand.hbm [shape: f32[4,128], index: 9, kind: output, shape index: {1}]
  %s10 = inlined_call_operand.vmem [shape: f32[2,4,128], index: 10, kind: output, shape index: {2}]
  %11 = xla_tuple %s8, %s9, %s10
  %s12 = sld [smem:[#allocation0]]
  $region66: #{multimodal_prompt_learner_forward.1} parent=0
    _
  %s14 = ssub.s32 1, %s12
  %s15 = scalar_select 0, %s14, %s12
  $region1: #{multimodal_prompt_learner_forward.1} parent=0
    #allocation4 [shape = 'u8[57344]{0}', space=vmem, size = 0xe000, scoped, tag = 'input window, operand 1, single buffered']
    #allocation5 [shape = 's32[1]{0}', space=sflag, size = 0x4, scoped, tag = 'scoped memory for multimodal_prompt_learner_forward.1']
    #allocation6 [shape = 's32[1]{0}', space=sflag, size = 0x4, scoped, tag = 'scoped memory for multimodal_prompt_learner_forward.1']
    #allocation7 [shape = 'u8[2048]{0}', space=vmem, size = 0x800, scoped, tag = 'input window, operand 2, single buffered']
    #allocation8 [shape = 's32[1]{0}', space=sflag, size = 0x4, scoped, tag = 'scoped memory for multimodal_prompt_learner_forward.1']
    #allocation9 [shape = 'u8[65536]{0}', space=vmem, size = 0x10000, scoped, tag = 'input window, operand 3, single buffered']
    #allocation10 [shape = 'u8[131072]{0}', space=vmem, size = 0x20000, scoped, tag = 'input window, operand 6, single buffered']
    #allocation11 [shape = 's32[1]{0}', space=sflag, size = 0x4, scoped, tag = 'scoped memory for multimodal_prompt_learner_forward.1']
    #allocation12 [shape = 'u8[1024]{0}', space=vmem, size = 0x400, scoped, tag = 'input window, operand 7, single buffered']
    #allocation13 [shape = 'u8[2048]{0}', space=vmem, size = 0x800, scoped, tag = 'output window, operand 1, single buffered']
    %16 = vsyncpa [#allocation5], 0
    %17 = vsyncpa [#allocation8], 0
    %18 = vsyncpa [#allocation11], 0
    %19 = vsyncpa [#allocation6], 0
    // Predicated region
    $region2: #{multimodal_prompt_learner_forward.1} parent=1 // pred_check
      _
    $region3: #{multimodal_prompt_learner_forward.1} parent=1 // pred_check_branch
      %21 = sbr.rel (0) target = $region5
    $region4: #{multimodal_prompt_learner_forward.1} parent=1 // pred_region
      %s23 = ssub.s32 1792, 1792
      %24 = vsyncadd [#allocation5], %s23
      %s25 = sshll.u32 [#allocation4], 4
      %s26 = int_to_ptr.vmem [resolvable:$true] %s25
      %31 = dma.hbm_to_vmem [thread:$0]  %s1, 1792, %s26, [#allocation5], 128, 128, 8
    $region5: #{multimodal_prompt_learner_forward.1} parent=1 // pred_fallthru
      _
    // Predicated region
    $region6: #{multimodal_prompt_learner_forward.1} parent=1 // pred_check
      _
    $region7: #{multimodal_prompt_learner_forward.1} parent=1 // pred_check_branch
      %33 = sbr.rel (0) target = $region9
    $region8: #{multimodal_prompt_learner_forward.1} parent=1 // pred_region
      %s35 = ssub.s32 64, 64
      %36 = vsyncadd [#allocation8], %s35
      %s38 = sshll.u32 [#allocation7], 4
      %s39 = int_to_ptr.vmem [resolvable:$true] %s38
      %41 = dma.hbm_to_vmem [thread:$0]  %s2, 64, %s39, [#allocation8]
    $region9: #{multimodal_prompt_learner_forward.1} parent=1 // pred_fallthru
      _
    // Predicated region
    $region10: #{multimodal_prompt_learner_forward.1} parent=1 // pred_check
      _
    $region11: #{multimodal_prompt_learner_forward.1} parent=1 // pred_check_branch
      %43 = sbr.rel (0) target = $region13
    $region12: #{multimodal_prompt_learner_forward.1} parent=1 // pred_region
      %s45 = ssub.s32 2048, 2048
      %46 = vsyncadd [#allocation8], %s45
      %s47 = sshll.u32 [#allocation9], 4
      %s48 = int_to_ptr.vmem [resolvable:$true] %s47
      %53 = dma.hbm_to_vmem [thread:$0]  %s3, 2048, %s48, [#allocation8], 128, 128, 8
    $region13: #{multimodal_prompt_learner_forward.1} parent=1 // pred_fallthru
      _
    // Predicated region
    $region14: #{multimodal_prompt_learner_forward.1} parent=1 // pred_check
      _
    $region15: #{multimodal_prompt_learner_forward.1} parent=1 // pred_check_branch
      %55 = sbr.rel (0) target = $region17
    $region16: #{multimodal_prompt_learner_forward.1} parent=1 // pred_region
      _
    $region17: #{multimodal_prompt_learner_forward.1} parent=1 // pred_fallthru
      _
    // Predicated region
    $region18: #{multimodal_prompt_learner_forward.1} parent=1 // pred_check
      _
    $region19: #{multimodal_prompt_learner_forward.1} parent=1 // pred_check_branch
      %57 = sbr.rel (0) target = $region21
    $region20: #{multimodal_prompt_learner_forward.1} parent=1 // pred_region
      _
    $region21: #{multimodal_prompt_learner_forward.1} parent=1 // pred_fallthru
      _
    // Predicated region
    $region22: #{multimodal_prompt_learner_forward.1} parent=1 // pred_check
      _
    $region23: #{multimodal_prompt_learner_forward.1} parent=1 // pred_check_branch
      %59 = sbr.rel (0) target = $region25
    $region24: #{multimodal_prompt_learner_forward.1} parent=1 // pred_region
      %s61 = ssub.s32 4096, 4096
      %62 = vsyncadd [#allocation11], %s61
      %s63 = sshll.u32 [#allocation10], 4
      %s64 = int_to_ptr.vmem [resolvable:$true] %s63
      %69 = dma.hbm_to_vmem [thread:$0]  %s6, 4096, %s64, [#allocation11], 128, 128, 8
    $region25: #{multimodal_prompt_learner_forward.1} parent=1 // pred_fallthru
      _
    // Predicated region
    $region26: #{multimodal_prompt_learner_forward.1} parent=1 // pred_check
      _
    $region27: #{multimodal_prompt_learner_forward.1} parent=1 // pred_check_branch
      %71 = sbr.rel (0) target = $region29
    $region28: #{multimodal_prompt_learner_forward.1} parent=1 // pred_region
      %s73 = ssub.s32 32, 32
      %74 = vsyncadd [#allocation11], %s73
      %s75 = sshll.u32 [#allocation12], 4
      %s76 = int_to_ptr.vmem [resolvable:$true] %s75
      %81 = dma.hbm_to_vmem [thread:$0]  %s7, 32, %s76, [#allocation11], 16, 16, 1
    $region29: #{multimodal_prompt_learner_forward.1} parent=1 // pred_fallthru
      _
    // Predicated region
    $region30: #{multimodal_prompt_learner_forward.1} parent=1 // pred_check
      _
    $region31: #{multimodal_prompt_learner_forward.1} parent=1 // pred_check_branch
      %83 = sbr.rel (0) target = $region33
    $region32: #{multimodal_prompt_learner_forward.1} parent=1 // pred_region
      %84 = dma.done [#allocation5], 1792
    $region33: #{multimodal_prompt_learner_forward.1} parent=1 // pred_fallthru
      _
    // Predicated region
    $region34: #{multimodal_prompt_learner_forward.1} parent=1 // pred_check
      _
    $region35: #{multimodal_prompt_learner_forward.1} parent=1 // pred_check_branch
      %86 = sbr.rel (0) target = $region37
    $region36: #{multimodal_prompt_learner_forward.1} parent=1 // pred_region
      %87 = dma.done [#allocation8], 64
    $region37: #{multimodal_prompt_learner_forward.1} parent=1 // pred_fallthru
      _
    // Predicated region
    $region38: #{multimodal_prompt_learner_forward.1} parent=1 // pred_check
      _
    $region39: #{multimodal_prompt_learner_forward.1} parent=1 // pred_check_branch
      %89 = sbr.rel (0) target = $region41
    $region40: #{multimodal_prompt_learner_forward.1} parent=1 // pred_region
      %90 = dma.done [#allocation8], 2048
    $region41: #{multimodal_prompt_learner_forward.1} parent=1 // pred_fallthru
      _
    // Predicated region
    $region42: #{multimodal_prompt_learner_forward.1} parent=1 // pred_check
      _
    $region43: #{multimodal_prompt_learner_forward.1} parent=1 // pred_check_branch
      %92 = sbr.rel (0) target = $region45
    $region44: #{multimodal_prompt_learner_forward.1} parent=1 // pred_region
      %93 = dma.done [#allocation11], 4096
    $region45: #{multimodal_prompt_learner_forward.1} parent=1 // pred_fallthru
      _
    // Predicated region
    $region46: #{multimodal_prompt_learner_forward.1} parent=1 // pred_check
      _
    $region47: #{multimodal_prompt_learner_forward.1} parent=1 // pred_check_branch
      %95 = sbr.rel (0) target = $region49
    $region48: #{multimodal_prompt_learner_forward.1} parent=1 // pred_region
      %96 = dma.done [#allocation11], 32
    $region49: #{multimodal_prompt_learner_forward.1} parent=1 // pred_fallthru
      _
    %v97 = vld [vmem:[#allocation4] sm:$0xff]
    %v98 = vld [vmem:[#allocation4 + $0x8] sm:$0xff]
    %v99 = vld [vmem:[#allocation4 + $0x10] sm:$0xff]
    %v100 = vld [vmem:[#allocation4 + $0x18] sm:$0xff]
    %v101 = vld [vmem:[#allocation4 + $0x20] sm:$0xff]
    %v102 = vld [vmem:[#allocation4 + $0x28] sm:$0xff]
    %v103 = vld [vmem:[#allocation4 + $0x30] sm:$0xff]
    %v104 = vld [vmem:[#allocation4 + $0x38] sm:$0xff]
    %v105 = vld [vmem:[#allocation4 + $0x40] sm:$0xff]
    %v106 = vld [vmem:[#allocation4 + $0x48] sm:$0xff]
    %v107 = vld [vmem:[#allocation4 + $0x50] sm:$0xff]
    %v108 = vld [vmem:[#allocation4 + $0x58] sm:$0xff]
    %v109 = vld [vmem:[#allocation4 + $0x60] sm:$0xff]
    %v110 = vld [vmem:[#allocation4 + $0x68] sm:$0xff]
    %111 = vst [vmem:[#allocation2] sm:$0xff] %v97
    %112 = vst [vmem:[#allocation2 + $0x8] sm:$0xff] %v98
    %113 = vst [vmem:[#allocation2 + $0x10] sm:$0xff] %v99
    %114 = vst [vmem:[#allocation2 + $0x18] sm:$0xff] %v100
    %115 = vst [vmem:[#allocation2 + $0x20] sm:$0xff] %v101
    %116 = vst [vmem:[#allocation2 + $0x28] sm:$0xff] %v102
    %117 = vst [vmem:[#allocation2 + $0x30] sm:$0xff] %v103
    %118 = vst [vmem:[#allocation2 + $0x38] sm:$0xff] %v104
    %119 = vst [vmem:[#allocation2 + $0x40] sm:$0xff] %v105
    %120 = vst [vmem:[#allocation2 + $0x48] sm:$0xff] %v106
    %121 = vst [vmem:[#allocation2 + $0x50] sm:$0xff] %v107
    %122 = vst [vmem:[#allocation2 + $0x58] sm:$0xff] %v108
    %123 = vst [vmem:[#allocation2 + $0x60] sm:$0xff] %v109
    %124 = vst [vmem:[#allocation2 + $0x68] sm:$0xff] %v110
    %v125 = vld [vmem:[#allocation7] sm:$0xf]
    %126 = vst [vmem:[#allocation2 + $0x1] sm:$0xf] %v125
    %127 = vst [vmem:[#allocation2 + $0x9] sm:$0xf] %v125
    %128 = vst [vmem:[#allocation2 + $0x11] sm:$0xf] %v125
    %129 = vst [vmem:[#allocation2 + $0x19] sm:$0xf] %v125
    %130 = vst [vmem:[#allocation2 + $0x21] sm:$0xf] %v125
    %131 = vst [vmem:[#allocation2 + $0x29] sm:$0xf] %v125
    %132 = vst [vmem:[#allocation2 + $0x31] sm:$0xf] %v125
    %133 = vst [vmem:[#allocation2 + $0x39] sm:$0xf] %v125
    %134 = vst [vmem:[#allocation2 + $0x41] sm:$0xf] %v125
    %135 = vst [vmem:[#allocation2 + $0x49] sm:$0xf] %v125
    %136 = vst [vmem:[#allocation2 + $0x51] sm:$0xf] %v125
    %137 = vst [vmem:[#allocation2 + $0x59] sm:$0xf] %v125
    %138 = vst [vmem:[#allocation2 + $0x61] sm:$0xf] %v125
    %139 = vst [vmem:[#allocation2 + $0x69] sm:$0xf] %v125
    %s141 = sshll.u32 [#allocation2], 4
    %s142 = int_to_ptr.vmem [resolvable:$true] %s141
    %144 = dma.vmem_to_hbm [thread:$0]  %s142, 1792, %s8, [#allocation3], 128, 256, 8
    %v145 = vld [vmem:[#allocation7] sm:$0xf]
    %v146 = vld [vmem:[#allocation9] sm:$0xff]
    %v147 = vld [vmem:[#allocation9 + $0x8] sm:$0xff]
    %v148 = vld [vmem:[#allocation9 + $0x10] sm:$0xff]
    %v149 = vld [vmem:[#allocation9 + $0x18] sm:$0xff]
    %v150 = vld [vmem:[#allocation9 + $0x20] sm:$0xff]
    %v151 = vld [vmem:[#allocation9 + $0x28] sm:$0xff]
    %v152 = vld [vmem:[#allocation9 + $0x30] sm:$0xff]
    %v153 = vld [vmem:[#allocation9 + $0x38] sm:$0xff]
    %v154 = vld [vmem:[#allocation9 + $0x40] sm:$0xff]
    %v155 = vld [vmem:[#allocation9 + $0x48] sm:$0xff]
    %v156 = vld [vmem:[#allocation9 + $0x50] sm:$0xff]
    %v157 = vld [vmem:[#allocation9 + $0x58] sm:$0xff]
    %v158 = vld [vmem:[#allocation9 + $0x60] sm:$0xff]
    %v159 = vld [vmem:[#allocation9 + $0x68] sm:$0xff]
    %v160 = vld [vmem:[#allocation9 + $0x70] sm:$0xff]
    %v161 = vld [vmem:[#allocation9 + $0x78] sm:$0xff]
    %v162 = vld [vmem:[%s4] sm:$0x1]
    %v164 = vlaneseq
    %v165 = vshrl.u32 %v164, 7
    %v166 = vsub.s32 0, %v165
    %v167 = vrot.slane %v162, %v166
    %169 = vmatprep.subr.mxu0 0.0
    %170 = vmatpush1.msra.mxu0 %v146
    %171 = vmatprep.subr.mxu0 0.0
    %172 = vmatpush1.msra.mxu0 %v147
    %173 = vmatprep.subr.mxu0 0.0
    %174 = vmatpush1.msra.mxu0 %v148
    %175 = vmatprep.subr.mxu0 0.0
    %176 = vmatpush1.msra.mxu0 %v149
    %177 = vmatprep.subr.mxu0 0.0
    %178 = vmatpush1.msra.mxu0 %v150
    %179 = vmatprep.subr.mxu0 0.0
    %180 = vmatpush1.msra.mxu0 %v151
    %181 = vmatprep.subr.mxu0 0.0
    %182 = vmatpush1.msra.mxu0 %v152
    %183 = vmatprep.subr.mxu0 0.0
    %184 = vmatpush1.msra.mxu0 %v153
    %185 = vmatprep.subr.mxu0 0.0
    %186 = vmatpush1.msra.mxu0 %v154
    %187 = vmatprep.subr.mxu0 0.0
    %188 = vmatpush1.msra.mxu0 %v155
    %189 = vmatprep.subr.mxu0 0.0
    %190 = vmatpush1.msra.mxu0 %v156
    %191 = vmatprep.subr.mxu0 0.0
    %192 = vmatpush1.msra.mxu0 %v157
    %193 = vmatprep.subr.mxu0 0.0
    %194 = vmatpush1.msra.mxu0 %v158
    %195 = vmatprep.subr.mxu0 0.0
    %196 = vmatpush1.msra.mxu0 %v159
    %197 = vmatprep.subr.mxu0 0.0
    %198 = vmatpush1.msra.mxu0 %v160
    %199 = vmatprep.subr.mxu0 0.0
    %200 = vmatpush1.msra.mxu0 %v161
    %201 = vmatprep.subr.mxu0 0.0
    %202 = vmatpush1.msra.mxu0 0.0
    %203 = vmatprep.subr.mxu0 0.0
    %204 = vmatpush1.msra.mxu0 0.0
    %205 = vmatprep.subr.mxu0 0.0
    %206 = vmatpush1.msra.mxu0 0.0
    %207 = vmatprep.subr.mxu0 0.0
    %208 = vmatpush1.msra.mxu0 0.0
    %209 = vmatprep.subr.mxu0 0.0
    %210 = vmatpush1.msra.mxu0 0.0
    %211 = vmatprep.subr.mxu0 0.0
    %212 = vmatpush1.msra.mxu0 0.0
    %213 = vmatprep.subr.mxu0 0.0
    %214 = vmatpush1.msra.mxu0 0.0
    %215 = vmatprep.subr.mxu0 0.0
    %216 = vmatpush1.msra.mxu0 0.0
    %217 = vmatprep.subr.mxu0 0.0
    %218 = vmatpush1.msra.mxu0 0.0
    %219 = vmatprep.subr.mxu0 0.0
    %220 = vmatpush1.msra.mxu0 0.0
    %221 = vmatprep.subr.mxu0 0.0
    %222 = vmatpush1.msra.mxu0 0.0
    %223 = vmatprep.subr.mxu0 0.0
    %224 = vmatpush1.msra.mxu0 0.0
    %225 = vmatprep.subr.mxu0 0.0
    %226 = vmatpush1.msra.mxu0 0.0
    %227 = vmatprep.subr.mxu0 0.0
    %228 = vmatpush1.msra.mxu0 0.0
    %229 = vmatprep.subr.mxu0 0.0
    %230 = vmatpush1.msra.mxu0 0.0
    %231 = vmatprep.subr.mxu0 0.0
    %232 = vmatpush1.msra.mxu0 0.0
    %233 = vmatprep.mubr.f32.mxu0 0.0
    %234 = vmatmul.mubr.f32.gmra.mrb[0].mxu0 %v145
    %v235 = vpop.f32.mrb[0].mxu0
    %v236 = vadd.f32 %v167, %v235
    %v237 = vpop.f32.mrb[0].mxu0
    %238 = vdwg.mxu0
    %239 = vst [vmem:[#allocation13] sm:$0xf] %v236
    %v240 = vld [vmem:[%s5] sm:$0xf]
    %v241 = vld [vmem:[#allocation10] sm:$0xff]
    %v242 = vld [vmem:[#allocation10 + $0x8] sm:$0xff]
    %v243 = vld [vmem:[#allocation10 + $0x10] sm:$0xff]
    %v244 = vld [vmem:[#allocation10 + $0x18] sm:$0xff]
    %v245 = vld [vmem:[#allocation10 + $0x20] sm:$0xff]
    %v246 = vld [vmem:[#allocation10 + $0x28] sm:$0xff]
    %v247 = vld [vmem:[#allocation10 + $0x30] sm:$0xff]
    %v248 = vld [vmem:[#allocation10 + $0x38] sm:$0xff]
    %v249 = vld [vmem:[#allocation10 + $0x40] sm:$0xff]
    %v250 = vld [vmem:[#allocation10 + $0x48] sm:$0xff]
    %v251 = vld [vmem:[#allocation10 + $0x50] sm:$0xff]
    %v252 = vld [vmem:[#allocation10 + $0x58] sm:$0xff]
    %v253 = vld [vmem:[#allocation10 + $0x60] sm:$0xff]
    %v254 = vld [vmem:[#allocation10 + $0x68] sm:$0xff]
    %v255 = vld [vmem:[#allocation10 + $0x70] sm:$0xff]
    %v256 = vld [vmem:[#allocation10 + $0x78] sm:$0xff]
    %v257 = vld [vmem:[#allocation12] sm:$0x1]
    %v259 = vlaneseq
    %v260 = vshrl.u32 %v259, 7
    %v261 = vsub.s32 0, %v260
    %v262 = vrot.slane %v257, %v261
    %264 = vmatprep.subr.mxu0 0.0
    %265 = vmatpush1.msra.mxu0 %v241
    %266 = vmatprep.subr.mxu0 0.0
    %267 = vmatpush1.msra.mxu0 %v242
    %268 = vmatprep.subr.mxu0 0.0
    %269 = vmatpush1.msra.mxu0 %v243
    %270 = vmatprep.subr.mxu0 0.0
    %271 = vmatpush1.msra.mxu0 %v244
    %272 = vmatprep.subr.mxu0 0.0
    %273 = vmatpush1.msra.mxu0 %v245
    %274 = vmatprep.subr.mxu0 0.0
    %275 = vmatpush1.msra.mxu0 %v246
    %276 = vmatprep.subr.mxu0 0.0
    %277 = vmatpush1.msra.mxu0 %v247
    %278 = vmatprep.subr.mxu0 0.0
    %279 = vmatpush1.msra.mxu0 %v248
    %280 = vmatprep.subr.mxu0 0.0
    %281 = vmatpush1.msra.mxu0 %v249
    %282 = vmatprep.subr.mxu0 0.0
    %283 = vmatpush1.msra.mxu0 %v250
    %284 = vmatprep.subr.mxu0 0.0
    %285 = vmatpush1.msra.mxu0 %v251
    %286 = vmatprep.subr.mxu0 0.0
    %287 = vmatpush1.msra.mxu0 %v252
    %288 = vmatprep.subr.mxu0 0.0
    %289 = vmatpush1.msra.mxu0 %v253
    %290 = vmatprep.subr.mxu0 0.0
    %291 = vmatpush1.msra.mxu0 %v254
    %292 = vmatprep.subr.mxu0 0.0
    %293 = vmatpush1.msra.mxu0 %v255
    %294 = vmatprep.subr.mxu0 0.0
    %295 = vmatpush1.msra.mxu0 %v256
    %296 = vmatprep.subr.mxu0 0.0
    %297 = vmatpush1.msra.mxu0 0.0
    %298 = vmatprep.subr.mxu0 0.0
    %299 = vmatpush1.msra.mxu0 0.0
    %300 = vmatprep.subr.mxu0 0.0
    %301 = vmatpush1.msra.mxu0 0.0
    %302 = vmatprep.subr.mxu0 0.0
    %303 = vmatpush1.msra.mxu0 0.0
    %304 = vmatprep.subr.mxu0 0.0
    %305 = vmatpush1.msra.mxu0 0.0
    %306 = vmatprep.subr.mxu0 0.0
    %307 = vmatpush1.msra.mxu0 0.0
    %308 = vmatprep.subr.mxu0 0.0
    %309 = vmatpush1.msra.mxu0 0.0
    %310 = vmatprep.subr.mxu0 0.0
    %311 = vmatpush1.msra.mxu0 0.0
    %312 = vmatprep.subr.mxu0 0.0
    %313 = vmatpush1.msra.mxu0 0.0
    %314 = vmatprep.subr.mxu0 0.0
    %315 = vmatpush1.msra.mxu0 0.0
    %316 = vmatprep.subr.mxu0 0.0
    %317 = vmatpush1.msra.mxu0 0.0
    %318 = vmatprep.subr.mxu0 0.0
    %319 = vmatpush1.msra.mxu0 0.0
    %320 = vmatprep.subr.mxu0 0.0
    %321 = vmatpush1.msra.mxu0 0.0
    %322 = vmatprep.subr.mxu0 0.0
    %323 = vmatpush1.msra.mxu0 0.0
    %324 = vmatprep.subr.mxu0 0.0
    %325 = vmatpush1.msra.mxu0 0.0
    %326 = vmatprep.subr.mxu0 0.0
    %327 = vmatpush1.msra.mxu0 0.0
    %328 = vmatprep.mubr.f32.mxu0 0.0
    %329 = vmatmul.mubr.f32.gmra.mrb[0].mxu0 %v240
    %v330 = vpop.f32.mrb[0].mxu0
    %v331 = vadd.f32 %v262, %v330
    %v332 = vpop.f32.mrb[0].mxu0
    %333 = vdwg.mxu0
    %334 = vst [vmem:[%s10] sm:$0xf] %v331
    %s335 = scalar_lea.vmem %s5, 4
    %v336 = vld [vmem:[%s335] sm:$0xf]
    %s337 = scalar_lea.vmem [#allocation10], 128
    %v338 = vld [vmem:[%s337] sm:$0xff]
    %v339 = vld [vmem:[%s337 + $0x8] sm:$0xff]
    %v340 = vld [vmem:[%s337 + $0x10] sm:$0xff]
    %v341 = vld [vmem:[%s337 + $0x18] sm:$0xff]
    %v342 = vld [vmem:[%s337 + $0x20] sm:$0xff]
    %v343 = vld [vmem:[%s337 + $0x28] sm:$0xff]
    %v344 = vld [vmem:[%s337 + $0x30] sm:$0xff]
    %v345 = vld [vmem:[%s337 + $0x38] sm:$0xff]
    %v346 = vld [vmem:[%s337 + $0x40] sm:$0xff]
    %v347 = vld [vmem:[%s337 + $0x48] sm:$0xff]
    %v348 = vld [vmem:[%s337 + $0x50] sm:$0xff]
    %v349 = vld [vmem:[%s337 + $0x58] sm:$0xff]
    %v350 = vld [vmem:[%s337 + $0x60] sm:$0xff]
    %v351 = vld [vmem:[%s337 + $0x68] sm:$0xff]
    %v352 = vld [vmem:[%s337 + $0x70] sm:$0xff]
    %v353 = vld [vmem:[%s337 + $0x78] sm:$0xff]
    %s354 = scalar_lea.vmem [#allocation12], 1
    %v355 = vld [vmem:[%s354] sm:$0x1]
    %v357 = vlaneseq
    %v358 = vshrl.u32 %v357, 7
    %v359 = vsub.s32 0, %v358
    %v360 = vrot.slane %v355, %v359
    %362 = vmatprep.subr.mxu0 0.0
    %363 = vmatpush1.msra.mxu0 %v338
    %364 = vmatprep.subr.mxu0 0.0
    %365 = vmatpush1.msra.mxu0 %v339
    %366 = vmatprep.subr.mxu0 0.0
    %367 = vmatpush1.msra.mxu0 %v340
    %368 = vmatprep.subr.mxu0 0.0
    %369 = vmatpush1.msra.mxu0 %v341
    %370 = vmatprep.subr.mxu0 0.0
    %371 = vmatpush1.msra.mxu0 %v342
    %372 = vmatprep.subr.mxu0 0.0
    %373 = vmatpush1.msra.mxu0 %v343
    %374 = vmatprep.subr.mxu0 0.0
    %375 = vmatpush1.msra.mxu0 %v344
    %376 = vmatprep.subr.mxu0 0.0
    %377 = vmatpush1.msra.mxu0 %v345
    %378 = vmatprep.subr.mxu0 0.0
    %379 = vmatpush1.msra.mxu0 %v346
    %380 = vmatprep.subr.mxu0 0.0
    %381 = vmatpush1.msra.mxu0 %v347
    %382 = vmatprep.subr.mxu0 0.0
    %383 = vmatpush1.msra.mxu0 %v348
    %384 = vmatprep.subr.mxu0 0.0
    %385 = vmatpush1.msra.mxu0 %v349
    %386 = vmatprep.subr.mxu0 0.0
    %387 = vmatpush1.msra.mxu0 %v350
    %388 = vmatprep.subr.mxu0 0.0
    %389 = vmatpush1.msra.mxu0 %v351
    %390 = vmatprep.subr.mxu0 0.0
    %391 = vmatpush1.msra.mxu0 %v352
    %392 = vmatprep.subr.mxu0 0.0
    %393 = vmatpush1.msra.mxu0 %v353
    %394 = vmatprep.subr.mxu0 0.0
    %395 = vmatpush1.msra.mxu0 0.0
    %396 = vmatprep.subr.mxu0 0.0
    %397 = vmatpush1.msra.mxu0 0.0
    %398 = vmatprep.subr.mxu0 0.0
    %399 = vmatpush1.msra.mxu0 0.0
    %400 = vmatprep.subr.mxu0 0.0
    %401 = vmatpush1.msra.mxu0 0.0
    %402 = vmatprep.subr.mxu0 0.0
    %403 = vmatpush1.msra.mxu0 0.0
    %404 = vmatprep.subr.mxu0 0.0
    %405 = vmatpush1.msra.mxu0 0.0
    %406 = vmatprep.subr.mxu0 0.0
    %407 = vmatpush1.msra.mxu0 0.0
    %408 = vmatprep.subr.mxu0 0.0
    %409 = vmatpush1.msra.mxu0 0.0
    %410 = vmatprep.subr.mxu0 0.0
    %411 = vmatpush1.msra.mxu0 0.0
    %412 = vmatprep.subr.mxu0 0.0
    %413 = vmatpush1.msra.mxu0 0.0
    %414 = vmatprep.subr.mxu0 0.0
    %415 = vmatpush1.msra.mxu0 0.0
    %416 = vmatprep.subr.mxu0 0.0
    %417 = vmatpush1.msra.mxu0 0.0
    %418 = vmatprep.subr.mxu0 0.0
    %419 = vmatpush1.msra.mxu0 0.0
    %420 = vmatprep.subr.mxu0 0.0
    %421 = vmatpush1.msra.mxu0 0.0
    %422 = vmatprep.subr.mxu0 0.0
    %423 = vmatpush1.msra.mxu0 0.0
    %424 = vmatprep.subr.mxu0 0.0
    %425 = vmatpush1.msra.mxu0 0.0
    %426 = vmatprep.mubr.f32.mxu0 0.0
    %427 = vmatmul.mubr.f32.gmra.mrb[0].mxu0 %v336
    %v428 = vpop.f32.mrb[0].mxu0
    %v429 = vadd.f32 %v360, %v428
    %v430 = vpop.f32.mrb[0].mxu0
    %431 = vdwg.mxu0
    %s432 = scalar_lea.vmem %s10, 4
    %433 = vst [vmem:[%s432] sm:$0xf] %v429
    %s434 = smul.u32 14, 8
    %s435 = smul.u32 %s434, 1
    %s436 = sshll.u32 %s435, 4
    %437 = dma.done [#allocation3], %s436
    // Predicated region
    $region50: #{multimodal_prompt_learner_forward.1} parent=1 // pred_check
      _
    $region51: #{multimodal_prompt_learner_forward.1} parent=1 // pred_check_branch
      %439 = sbr.rel (0) target = $region53
    $region52: #{multimodal_prompt_learner_forward.1} parent=1 // pred_region
      %s441 = ssub.s32 64, 64
      %442 = vsyncadd [#allocation6], %s441
      %s444 = sshll.u32 [#allocation13], 4
      %s445 = int_to_ptr.vmem [resolvable:$true] %s444
      %447 = dma.vmem_to_hbm [thread:$0]  %s445, 64, %s9, [#allocation6]
    $region53: #{multimodal_prompt_learner_forward.1} parent=1 // pred_fallthru
      _
    // Predicated region
    $region54: #{multimodal_prompt_learner_forward.1} parent=1 // pred_check
      _
    $region55: #{multimodal_prompt_learner_forward.1} parent=1 // pred_check_branch
      %449 = sbr.rel (0) target = $region57
    $region56: #{multimodal_prompt_learner_forward.1} parent=1 // pred_region
      _
    $region57: #{multimodal_prompt_learner_forward.1} parent=1 // pred_fallthru
      _
    // Predicated region
    $region58: #{multimodal_prompt_learner_forward.1} parent=1 // pred_check
      _
    $region59: #{multimodal_prompt_learner_forward.1} parent=1 // pred_check_branch
      %451 = sbr.rel (0) target = $region61
    $region60: #{multimodal_prompt_learner_forward.1} parent=1 // pred_region
      %452 = dma.done [#allocation6], 64
    $region61: #{multimodal_prompt_learner_forward.1} parent=1 // pred_fallthru
      _
    // Predicated region
    $region62: #{multimodal_prompt_learner_forward.1} parent=1 // pred_check
      _
    $region63: #{multimodal_prompt_learner_forward.1} parent=1 // pred_check_branch
      %454 = sbr.rel (0) target = $region65
    $region64: #{multimodal_prompt_learner_forward.1} parent=1 // pred_region
      _
    $region65: #{multimodal_prompt_learner_forward.1} parent=1 // pred_fallthru
      _
    %455 = vsyncpa [#allocation5], 1
    %456 = vsyncpa [#allocation8], 1
    %457 = vsyncpa [#allocation11], 1
    %458 = vsyncpa [#allocation6], 1
  %459 = vsyncmov [#allocation3]
  %s460 = vpop.sfrf %459
  %p461 = scmp.eq.s32.totalorder %s460, 0
  %p462 = pneg %p461
  %464 = shalt.err (%p462)

</llo_original>
